<compile_context>
chip_gen: v6e
topology: v6e:2x2x1
jax: 0.10.0
libtpu: 0.0.40
codegen_flags: <defaults>
</compile_context>

<pallas_src>
import functools

import jax
import jax.numpy as jnp
from jax.experimental import pallas as pl
from jax.experimental.pallas import tpu as pltpu

P_DROP = 0.05
KEEP_PROB = 1.0 - P_DROP
# keep element iff hash(u32) < threshold  (unsigned compare)
_KEEP_THRESHOLD_U32 = int(KEEP_PROB * (2.0 ** 32))


def _hash_u32(x):
    """lowbias32 integer hash: uniform-ish u32 -> u32 (pure VPU ops)."""
    x = x * jnp.uint32(0x9E3779B1)
    x = x ^ (x >> 16)
    x = x * jnp.uint32(0x21F0AAAD)
    x = x ^ (x >> 15)
    x = x * jnp.uint32(0x735A2D97)
    x = x ^ (x >> 15)
    return x


def _additive_decomp_kernel(dense_ref, sparse_ref, out_ref, *,
                            seed, tile_rows, n_cols):
    """out = dropout(dense, p=0.05, train=True) + sparse, for one (TR, C) tile."""
    i = pl.program_id(0)
    rows, cols = dense_ref.shape

    # Globally-unique element index -> counter-based PRNG, decorrelated per tile.
    local_row = jax.lax.broadcasted_iota(jnp.int32, (rows, cols), 0)
    col = jax.lax.broadcasted_iota(jnp.int32, (rows, cols), 1)
    global_row = (local_row + i * tile_rows).astype(jnp.uint32)
    flat_idx = global_row * jnp.uint32(n_cols) + col.astype(jnp.uint32)
    bits = _hash_u32(flat_idx ^ jnp.uint32(seed & 0xFFFFFFFF))
    keep = bits < jnp.uint32(_KEEP_THRESHOLD_U32)

    # Inverted-dropout scaling; kernel is HBM-bound so this VPU work is free.
    scale = jnp.where(keep, jnp.float32(1.0 / KEEP_PROB), jnp.float32(0.0))
    out_ref[...] = (dense_ref[...] * scale + sparse_ref[...]).astype(out_ref.dtype)


def additive_decomposed_weight_fwd(dense_weight, sparse_weight1, seed=0,
                                   target_block_bytes=4 * 1024 * 1024):
    """Pallas implementation of additive_decomposed_weight.forward().

    dense_weight, sparse_weight1: float32 [R, C].  Returns float32 [R, C].
    """
    assert dense_weight.shape == sparse_weight1.shape
    assert dense_weight.ndim == 2
    R, C = dense_weight.shape

    # Row-tile size: largest multiple of 8 whose (TR, C) block is ~<=4 MiB, so
    # the 6 double-buffered blocks (~24 MiB) fit the scoped VMEM budget on
    # v6e/v7x (flag below covers v5e's 16 MiB default).
    itemsize = jnp.dtype(dense_weight.dtype).itemsize
    bytes_per_row = max(1, C * itemsize)
    tr = max(1, target_block_bytes // bytes_per_row)
    if tr >= R:
        tr = R                       # full row extent -> always layout-legal
    else:
        tr = max(8, (tr // 8) * 8)   # (8, 128) sublane constraint

    grid = (pl.cdiv(R, tr),)
    kernel = functools.partial(_additive_decomp_kernel, seed=int(seed),
                               tile_rows=tr, n_cols=C)

    return pl.pallas_call(
        kernel,
        out_shape=jax.ShapeDtypeStruct((R, C), dense_weight.dtype),
        grid=grid,
        in_specs=[
            pl.BlockSpec((tr, C), lambda i: (i, 0)),   # dense_weight tile
            pl.BlockSpec((tr, C), lambda i: (i, 0)),   # sparse_weight1 tile
        ],
        out_specs=pl.BlockSpec((tr, C), lambda i: (i, 0)),  # lane-dense output
        compiler_params=pltpu.CompilerParams(
            dimension_semantics=("parallel",),          # shard tiles across TCs (v7x)
            vmem_limit_bytes=48 * 1024 * 1024,          # cover v5e's 16 MiB default
        ),
    )(dense_weight, sparse_weight1)


if __name__ == "__main__":
    # Deterministic parameter init matching the module's __init__ (value=None):
    #   dense_weight   = randn(shape)
    #   sparse_weight1 = scale * zeros(shape)   (scale=1)
    #   sparse_weight2 = scale * randn(shape)   (unused: sparse1=True)
    shape = (32, 128)
    key = jax.random.PRNGKey(0)
    k_dense, k_sparse2 = jax.random.split(key)
    dense_weight = jax.random.normal(k_dense, shape, dtype=jnp.float32)
    sparse_weight1 = jnp.zeros(shape, dtype=jnp.float32)
    sparse_weight2 = jax.random.normal(k_sparse2, shape, dtype=jnp.float32)  # unused path

    weight = additive_decomposed_weight_fwd(dense_weight, sparse_weight1, seed=0)
    weight = jax.block_until_ready(weight)

    # Sanity checks: shape/dtype, ~95% of elements kept, kept ones == dense/0.95
    # (sparse_weight1 is all zeros, so dropped elements are exactly 0).
    assert weight.shape == shape and weight.dtype == jnp.float32
    kept = weight != 0
    kept_frac = float(jnp.mean(kept.astype(jnp.float32)))
    assert 0.85 <= kept_frac <= 1.0, f"unexpected keep fraction {kept_frac}"
    expected = dense_weight / KEEP_PROB
    max_err = float(jnp.max(jnp.abs(jnp.where(kept, weight - expected, 0.0))))
    assert max_err < 1e-5, f"kept-element scaling mismatch: {max_err}"

    print("KERNEL_OK")
</pallas_src>

<mosaic_0001>
module attributes {stable_mosaic.version = 11 : i64} {
  func.func @_additive_decomp_kernel(%arg0: i32, %arg1: memref<32x128xf32, #tpu.memory_space<vmem>>, %arg2: memref<32x128xf32, #tpu.memory_space<vmem>>, %arg3: memref<32x128xf32, #tpu.memory_space<vmem>>) attributes {dimension_semantics = [#tpu.dimension_semantics<parallel>], iteration_bounds = array<i64: 1>, scalar_prefetch = 0 : i64, scratch_operands = 0 : i64, tpu.core_type = #tpu.core_type<tc>, window_params = [{transform_indices = @transform_0, window_bounds = array<i64: 32, 128>}, {transform_indices = @transform_1, window_bounds = array<i64: 32, 128>}, {transform_indices = @transform_2, window_bounds = array<i64: 32, 128>}]} {
    %0 = tpu.iota {dimensions = array<i32: 0>} : vector<32x128xi32>
    %1 = tpu.iota {dimensions = array<i32: 1>} : vector<32x128xi32>
    %c32_i32 = arith.constant 32 : i32
    %2 = arith.muli %arg0, %c32_i32 : i32
    %3 = vector.broadcast %2 : i32 to vector<32x128xi32>
    %4 = arith.addi %0, %3 : vector<32x128xi32>
    %c128_i32 = arith.constant 128 : i32
    %5 = vector.broadcast %c128_i32 : i32 to vector<32x128xi32>
    %6 = arith.muli %4, %5 : vector<32x128xi32>
    %7 = arith.addi %6, %1 : vector<32x128xi32>
    %c0_i32 = arith.constant 0 : i32
    %8 = vector.broadcast %c0_i32 : i32 to vector<32x128xi32>
    %9 = arith.xori %7, %8 : vector<32x128xi32>
    %c-1640531535_i32 = arith.constant -1640531535 : i32
    %10 = vector.broadcast %c-1640531535_i32 : i32 to vector<32x128xi32>
    %11 = arith.muli %9, %10 : vector<32x128xi32>
    %c16_i32 = arith.constant 16 : i32
    %12 = vector.broadcast %c16_i32 : i32 to vector<32x128xi32>
    %13 = arith.shrui %11, %12 : vector<32x128xi32>
    %14 = arith.xori %11, %13 : vector<32x128xi32>
    %c569420461_i32 = arith.constant 569420461 : i32
    %15 = vector.broadcast %c569420461_i32 : i32 to vector<32x128xi32>
    %16 = arith.muli %14, %15 : vector<32x128xi32>
    %c15_i32 = arith.constant 15 : i32
    %17 = vector.broadcast %c15_i32 : i32 to vector<32x128xi32>
    %18 = arith.shrui %16, %17 : vector<32x128xi32>
    %19 = arith.xori %16, %18 : vector<32x128xi32>
    %c1935289751_i32 = arith.constant 1935289751 : i32
    %20 = vector.broadcast %c1935289751_i32 : i32 to vector<32x128xi32>
    %21 = arith.muli %19, %20 : vector<32x128xi32>
    %c15_i32_0 = arith.constant 15 : i32
    %22 = vector.broadcast %c15_i32_0 : i32 to vector<32x128xi32>
    %23 = arith.shrui %21, %22 : vector<32x128xi32>
    %24 = arith.xori %21, %23 : vector<32x128xi32>
    %c-214748365_i32 = arith.constant -214748365 : i32
    %25 = vector.broadcast %c-214748365_i32 : i32 to vector<32x128xi32>
    %26 = arith.cmpi ult, %24, %25 : vector<32x128xi32>
    %cst = arith.constant 1.05263162 : f32
    %cst_1 = arith.constant 0.000000e+00 : f32
    %27 = vector.broadcast %cst : f32 to vector<32x128xf32>
    %28 = vector.broadcast %cst_1 : f32 to vector<32x128xf32>
    %29 = arith.select %26, %27, %28 : vector<32x128xi1>, vector<32x128xf32>
    %c0 = arith.constant 0 : index
    %c0_2 = arith.constant 0 : index
    %30 = vector.load %arg1[%c0, %c0_2] : memref<32x128xf32, #tpu.memory_space<vmem>>, vector<32x128xf32>
    %31 = arith.mulf %30, %29 : vector<32x128xf32>
    %c0_3 = arith.constant 0 : index
    %c0_4 = arith.constant 0 : index
    %32 = vector.load %arg2[%c0_3, %c0_4] : memref<32x128xf32, #tpu.memory_space<vmem>>, vector<32x128xf32>
    %33 = arith.addf %31, %32 : vector<32x128xf32>
    %c0_5 = arith.constant 0 : index
    %c0_6 = arith.constant 0 : index
    %34 = vector.load %arg3[%c0_5, %c0_6] : memref<32x128xf32, #tpu.memory_space<vmem>>, vector<32x128xf32>
    tpu.vector_store %arg3[%c0_5, %c0_6], %33 {strides = array<i32>} : memref<32x128xf32, #tpu.memory_space<vmem>>, vector<32x128xf32>,
    return
  }
  func.func @transform_0(%arg0: i32) -> (i32, i32) {
    %c0_i32 = arith.constant 0 : i32
    %c0_i32_0 = arith.constant 0 : i32
    return %arg0, %c0_i32 : i32, i32
  }
  func.func @transform_1(%arg0: i32) -> (i32, i32) {
    %c0_i32 = arith.constant 0 : i32
    %c0_i32_0 = arith.constant 0 : i32
    return %arg0, %c0_i32 : i32, i32
  }
  func.func @transform_2(%arg0: i32) -> (i32, i32) {
    %c0_i32 = arith.constant 0 : i32
    %c0_i32_0 = arith.constant 0 : i32
    return %arg0, %c0_i32 : i32, i32
  }
}

</mosaic_0001>

<llo_original>
// kernel: tpu_custom_call.1
$region0: #{tpu_custom_call.1}
  #allocation0 [shape = 'u32[]', space=smem, size = 0x4, offset = 0x4, fixed_abs, tag = 'smem constant byte address 0x4 - core index']
  #allocation1 [shape = 'u32[144,128]{1,0:T(1,128)}', space=vmem, size = 0x12000, scoped, tag = 'internal scratch']
  %s0 = inlined_call_operand.hbm [shape: f32[32,128], index: 0, kind: input, shape index: {}]
  %s1 = inlined_call_operand.hbm [shape: f32[32,128], index: 1, kind: input, shape index: {}]
  %s2 = inlined_call_operand.hbm [shape: f32[32,128], index: 2, kind: output, shape index: {}]
  %s3 = sld [smem:[#allocation0]]
  $region26: #{tpu_custom_call.1} parent=0
    _
  %s5 = ssub.s32 1, %s3
  %s6 = scalar_select 0, %s5, %s3
  $region1: #{tpu_custom_call.1} parent=0
    #allocation2 [shape = 'u8[16384]{0}', space=vmem, size = 0x4000, scoped, tag = 'input window, operand 0, single buffered']
    #allocation3 [shape = 's32[1]{0}', space=sflag, size = 0x4, scoped, tag = 'scoped memory for tpu_custom_call.1']
    #allocation4 [shape = 's32[1]{0}', space=sflag, size = 0x4, scoped, tag = 'scoped memory for tpu_custom_call.1']
    #allocation5 [shape = 'u8[16384]{0}', space=vmem, size = 0x4000, scoped, tag = 'input window, operand 1, single buffered']
    #allocation6 [shape = 's32[1]{0}', space=sflag, size = 0x4, scoped, tag = 'scoped memory for tpu_custom_call.1']
    #allocation7 [shape = 'u8[16384]{0}', space=vmem, size = 0x4000, scoped, tag = 'output window, operand 0, single buffered']
    %7 = vsyncpa [#allocation3], 0
    %8 = vsyncpa [#allocation6], 0
    %9 = vsyncpa [#allocation4], 0
    // Predicated region
    $region2: #{tpu_custom_call.1} parent=1 // pred_check
      _
    $region3: #{tpu_custom_call.1} parent=1 // pred_check_branch
      %11 = sbr.rel (0) target = $region5
    $region4: #{tpu_custom_call.1} parent=1 // pred_region
      %s13 = ssub.s32 512, 512
      %14 = vsyncadd [#allocation3], %s13
      %s15 = sshll.u32 [#allocation2], 4
      %s16 = int_to_ptr.vmem [resolvable:$true] %s15
      %21 = dma.hbm_to_vmem [thread:$0]  %s0, 512, %s16, [#allocation3], 128, 128, 8
    $region5: #{tpu_custom_call.1} parent=1 // pred_fallthru
      _
    // Predicated region
    $region6: #{tpu_custom_call.1} parent=1 // pred_check
      _
    $region7: #{tpu_custom_call.1} parent=1 // pred_check_branch
      %23 = sbr.rel (0) target = $region9
    $region8: #{tpu_custom_call.1} parent=1 // pred_region
      %s25 = ssub.s32 512, 512
      %26 = vsyncadd [#allocation6], %s25
      %s27 = sshll.u32 [#allocation5], 4
      %s28 = int_to_ptr.vmem [resolvable:$true] %s27
      %33 = dma.hbm_to_vmem [thread:$0]  %s1, 512, %s28, [#allocation6], 128, 128, 8
    $region9: #{tpu_custom_call.1} parent=1 // pred_fallthru
      _
    // Predicated region
    $region10: #{tpu_custom_call.1} parent=1 // pred_check
      _
    $region11: #{tpu_custom_call.1} parent=1 // pred_check_branch
      %35 = sbr.rel (0) target = $region13
    $region12: #{tpu_custom_call.1} parent=1 // pred_region
      %36 = dma.done [#allocation3], 512
    $region13: #{tpu_custom_call.1} parent=1 // pred_fallthru
      _
    // Predicated region
    $region14: #{tpu_custom_call.1} parent=1 // pred_check
      _
    $region15: #{tpu_custom_call.1} parent=1 // pred_check_branch
      %38 = sbr.rel (0) target = $region17
    $region16: #{tpu_custom_call.1} parent=1 // pred_region
      %39 = dma.done [#allocation6], 512
    $region17: #{tpu_custom_call.1} parent=1 // pred_fallthru
      _
    %v40 = vlaneseq
    %v41 = vshrl.u32 %v40, 7
    %v42 = vadd.s32 %v41, 8
    %v43 = vadd.s32 %v41, 16
    %v44 = vadd.s32 %v41, 24
    %v45 = vlaneseq
    %v46 = vand.u32 %v45, 127
    %s47 = smul.u32 0, 32
    %v48 = vstv %s47
    %v49 = vadd.s32 %v41, %v48
    %v50 = vadd.s32 %v42, %v48
    %v51 = vadd.s32 %v43, %v48
    %v52 = vadd.s32 %v44, %v48
    %v53 = vmul.u32 %v49, 128
    %v54 = vmul.u32 %v50, 128
    %v55 = vmul.u32 %v51, 128
    %v56 = vmul.u32 %v52, 128
    %v57 = vadd.s32 %v53, %v46
    %v58 = vadd.s32 %v54, %v46
    %v59 = vadd.s32 %v55, %v46
    %v60 = vadd.s32 %v56, %v46
    %v61 = vmul.u32 %v57, 2654435761
    %v62 = vmul.u32 %v58, 2654435761
    %v63 = vmul.u32 %v59, 2654435761
    %v64 = vmul.u32 %v60, 2654435761
    %v65 = vshrl.u32 %v61, 16
    %v66 = vshrl.u32 %v62, 16
    %v67 = vshrl.u32 %v63, 16
    %v68 = vshrl.u32 %v64, 16
    %v69 = vxor.u32 %v61, %v65
    %v70 = vxor.u32 %v62, %v66
    %v71 = vxor.u32 %v63, %v67
    %v72 = vxor.u32 %v64, %v68
    %v73 = vmul.u32 %v69, 569420461
    %v74 = vmul.u32 %v70, 569420461
    %v75 = vmul.u32 %v71, 569420461
    %v76 = vmul.u32 %v72, 569420461
    %v77 = vshrl.u32 %v73, 15
    %v78 = vshrl.u32 %v74, 15
    %v79 = vshrl.u32 %v75, 15
    %v80 = vshrl.u32 %v76, 15
    %v81 = vxor.u32 %v73, %v77
    %v82 = vxor.u32 %v74, %v78
    %v83 = vxor.u32 %v75, %v79
    %v84 = vxor.u32 %v76, %v80
    %v85 = vmul.u32 %v81, 1935289751
    %v86 = vmul.u32 %v82, 1935289751
    %v87 = vmul.u32 %v83, 1935289751
    %v88 = vmul.u32 %v84, 1935289751
    %v89 = vshrl.u32 %v85, 15
    %v90 = vshrl.u32 %v86, 15
    %v91 = vshrl.u32 %v87, 15
    %v92 = vshrl.u32 %v88, 15
    %v93 = vxor.u32 %v85, %v89
    %v94 = vxor.u32 %v86, %v90
    %v95 = vxor.u32 %v87, %v91
    %v96 = vxor.u32 %v88, %v92
    %vm97 = vcmp.lt.u32.totalorder %v93, 4080218931
    %vm98 = vcmp.lt.u32.totalorder %v94, 4080218931
    %vm99 = vcmp.lt.u32.totalorder %v95, 4080218931
    %vm100 = vcmp.lt.u32.totalorder %v96, 4080218931
    %v101 = vsel %vm97, 1.0526316, 0.0
    %v102 = vsel %vm98, 1.0526316, 0.0
    %v103 = vsel %vm99, 1.0526316, 0.0
    %v104 = vsel %vm100, 1.0526316, 0.0
    %v105 = vld [vmem:[#allocation2] sm:$0xff]
    %v106 = vld [vmem:[#allocation2 + $0x8] sm:$0xff]
    %v107 = vld [vmem:[#allocation2 + $0x10] sm:$0xff]
    %v108 = vld [vmem:[#allocation2 + $0x18] sm:$0xff]
    %v109 = vmul.f32 %v105, %v101
    %v110 = vmul.f32 %v106, %v102
    %v111 = vmul.f32 %v107, %v103
    %v112 = vmul.f32 %v108, %v104
    %v113 = vld [vmem:[#allocation5] sm:$0xff]
    %v114 = vld [vmem:[#allocation5 + $0x8] sm:$0xff]
    %v115 = vld [vmem:[#allocation5 + $0x10] sm:$0xff]
    %v116 = vld [vmem:[#allocation5 + $0x18] sm:$0xff]
    %v117 = vadd.f32 %v109, %v113
    %v118 = vadd.f32 %v110, %v114
    %v119 = vadd.f32 %v111, %v115
    %v120 = vadd.f32 %v112, %v116
    %121 = vst [vmem:[#allocation7] sm:$0xff] %v117
    %122 = vst [vmem:[#allocation7 + $0x8] sm:$0xff] %v118
    %123 = vst [vmem:[#allocation7 + $0x10] sm:$0xff] %v119
    %124 = vst [vmem:[#allocation7 + $0x18] sm:$0xff] %v120
    // Predicated region
    $region18: #{tpu_custom_call.1} parent=1 // pred_check
      _
    $region19: #{tpu_custom_call.1} parent=1 // pred_check_branch
      %126 = sbr.rel (0) target = $region21
    $region20: #{tpu_custom_call.1} parent=1 // pred_region
      %s128 = ssub.s32 512, 512
      %129 = vsyncadd [#allocation4], %s128
      %s130 = sshll.u32 [#allocation7], 4
      %s131 = int_to_ptr.vmem [resolvable:$true] %s130
      %136 = dma.vmem_to_hbm [thread:$0]  %s131, 512, %s2, [#allocation4], 128, 128, 8
    $region21: #{tpu_custom_call.1} parent=1 // pred_fallthru
      _
    // Predicated region
    $region22: #{tpu_custom_call.1} parent=1 // pred_check
      _
    $region23: #{tpu_custom_call.1} parent=1 // pred_check_branch
      %138 = sbr.rel (0) target = $region25
    $region24: #{tpu_custom_call.1} parent=1 // pred_region
      %139 = dma.done [#allocation4], 512
    $region25: #{tpu_custom_call.1} parent=1 // pred_fallthru
      _
    %140 = vsyncpa [#allocation3], 1
    %141 = vsyncpa [#allocation6], 1
    %142 = vsyncpa [#allocation4], 1

</llo_original>
